<compile_context>
chip_gen: v5e
topology: v5e:2x2
jax: 0.10.0
libtpu: 0.0.40
codegen_flags: <defaults>
</compile_context>

<pallas_src>
import functools

import jax
import jax.numpy as jnp
from jax import lax
from jax.experimental import pallas as pl
from jax.experimental.pallas import tpu as pltpu


def additive_attention_kernel(vlen_ref, q_ref, k_ref, v_ref, wq_ref, wk_ref,
                              wv_ref, o_ref, *, mxu_dtype, tanh_dtype):
    """One (batch block, query block) tile per grid step.

    vlen_ref : VMEM (Bt, Tq, 1) int32   per-(batch, query) valid lengths
    q_ref    : VMEM (Bt, Tq, Dq)        queries
    k_ref    : VMEM (Bt, K,  Dk)        keys (full, unpadded K)
    v_ref    : VMEM (Bt, K,  Dv)        values
    wq_ref   : VMEM (Dq, H)
    wk_ref   : VMEM (Dk, H)
    wv_ref   : SMEM (H,)                w_v weights as scalars
    o_ref    : VMEM (Bt, Tq, Dv)
    """
    Bt, Tq, Dq = q_ref.shape
    _, K, _ = k_ref.shape
    H = wq_ref.shape[1]
    R = Bt * Tq

    # --- projections: one flattened MXU matmul each --------------------------
    q2 = q_ref[...].reshape(R, Dq)
    qh = jnp.dot(q2.astype(mxu_dtype), wq_ref[...].astype(mxu_dtype),
                 preferred_element_type=jnp.float32)               # (R, H)
    k2 = k_ref[...].reshape(Bt * K, Dk)
    kh = jnp.dot(k2.astype(mxu_dtype), wk_ref[...].astype(mxu_dtype),
                 preferred_element_type=jnp.float32)               # (Bt*K, H)
    # One batched minor-dim transpose so K stays on lanes in the score loop.
    kht = jnp.swapaxes(kh.reshape(Bt, K, H), 1, 2)                 # (Bt, H, K)

    qh_t = qh.astype(tanh_dtype)
    kht_t = kht.astype(tanh_dtype)

    # --- additive scores accumulated over H (f32 accumulator) ----------------
    # TODO(synk): for large H switch the static unroll to a chunked
    # lax.fori_loop to bound vreg live ranges.
    if Tq == 1:
        # Q folded into sublanes: 2-D (Bt, K) tiles keep the EUP-bound tanh
        # fully sublane-occupied (Q = 1 is the d2l case).
        scores = jnp.zeros((Bt, K), jnp.float32)
        for h in range(H):
            scores = scores + wv_ref[h] * jnp.tanh(
                qh_t[:, h:h + 1] + kht_t[:, h, :]).astype(jnp.float32)
    else:
        qh3 = qh_t.reshape(Bt, Tq, H)
        s3 = jnp.zeros((Bt, Tq, K), jnp.float32)
        for h in range(H):
            s3 = s3 + wv_ref[h] * jnp.tanh(
                qh3[:, :, h:h + 1] + kht_t[:, h:h + 1, :]).astype(jnp.float32)
        scores = s3.reshape(R, K)

    # --- masked softmax over keys (matches d2l masked_softmax, value=-1e6) ---
    vlen = vlen_ref[...].reshape(R, 1)
    col = lax.broadcasted_iota(jnp.int32, (R, K), 1)
    scores = jnp.where(col < vlen, scores, jnp.float32(-1e6))

    m = jnp.max(scores, axis=-1, keepdims=True)
    e = jnp.exp(scores - m)
    denom = jnp.sum(e, axis=-1, keepdims=True)
    inv = pl.reciprocal(denom, approx=True)          # EUP slot
    inv = inv * (2.0 - denom * inv)                  # Newton step -> f32 accuracy
    attn = e * inv                                   # (R, K)

    # TODO(synk): dropout is eval-mode identity here; training-mode dropout
    # would use pltpu.prng_seed + pltpu.stateful_bernoulli on `attn`.

    # --- weighted sum of values (batched MXU matmul) --------------------------
    out = jnp.einsum("bqk,bkd->bqd",
                     attn.reshape(Bt, Tq, K).astype(mxu_dtype),
                     v_ref[...].astype(mxu_dtype),
                     preferred_element_type=jnp.float32)           # (Bt, Tq, Dv)
    o_ref[...] = out.astype(o_ref.dtype)


def _round_up(x, m):
    return (x + m - 1) // m * m


def _default_tanh_dtype():
    # bf16 tanh only helps on chips with a bf16 VPU/EUP path (v6e / v7x);
    # on v5e and older it just adds converts.
    try:
        kind = jax.devices()[0].device_kind.lower()
    except Exception:  # defensive: fall back to the always-correct path
        return jnp.float32
    if any(v in kind for v in ("v2", "v3", "v4", "v5")):
        return jnp.float32
    return jnp.bfloat16


def additive_attention(queries, keys, values, valid_lens, Wq, Wk, wv, *,
                       block_b=8, block_q=128,
                       mxu_dtype=jnp.bfloat16, tanh_dtype=None):
    """Forward pass of d2l AdditiveAttention (eval mode).

    queries: (B, Q, Dq)  keys: (B, K, Dk)  values: (B, K, Dv)
    valid_lens: None, (B,) or (B, Q) int   Wq: (Dq, H)  Wk: (Dk, H)  wv: (1,H)/(H,)
    """
    B, Q, Dq = queries.shape
    _, K, Dk = keys.shape
    _, _, Dv = values.shape
    H = Wq.shape[1]
    if tanh_dtype is None:
        tanh_dtype = _default_tanh_dtype()

    # Batch tile: keep >= 2 grid steps when B >= 2 so the "parallel" batch axis
    # actually shards across v7x's two TensorCores; pad B up to a multiple.
    Bt = max(1, min(block_b, (B + 1) // 2))
    B_pad = _round_up(B, Bt)

    # Query tile: whole Q when small (block then equals the full dim, which
    # satisfies the (8,128) rule); otherwise an 8-aligned tile of <= block_q.
    if Q <= 8:
        Tq, Q_pad = Q, Q
    else:
        Tq = min(_round_up(block_q, 8), _round_up(Q, 8))
        Q_pad = _round_up(Q, Tq)

    # TODO(synk): K is not tiled (no online-softmax accumulator); very long K
    # would need a third grid axis with running max/sum scratch.
    # TODO(synk): for K << 128 lane occupancy could be raised further by packing
    # several batch elements' key ranges into one 128-lane row with a block mask.

    qp = jnp.pad(queries, ((0, B_pad - B), (0, Q_pad - Q), (0, 0)))
    kp = jnp.pad(keys, ((0, B_pad - B), (0, 0), (0, 0)))
    vp = jnp.pad(values, ((0, B_pad - B), (0, 0), (0, 0)))

    if valid_lens is None:
        vl = jnp.full((B, Q), K, dtype=jnp.int32)
    else:
        vl = jnp.asarray(valid_lens).astype(jnp.int32)
        vl = jnp.broadcast_to(vl[:, None], (B, Q)) if vl.ndim == 1 else vl
    # Padded batch / query rows get valid_len = 0 (their outputs are sliced off).
    vlp = jnp.pad(vl, ((0, B_pad - B), (0, Q_pad - Q)))[:, :, None]

    wv_flat = jnp.asarray(wv).reshape(H)

    grid = (B_pad // Bt, Q_pad // Tq)

    # Per-step VMEM footprint estimate -> scoped VMEM limit (< v7x 64 MiB).
    f32 = 4
    step_bytes = f32 * (
        2 * (Bt * Tq * (Dq + Dv + 1) + Bt * K * (Dk + Dv))      # double-buffered I/O
        + 2 * (Dq * H + Dk * H)                                 # weights
        + 3 * Bt * Tq * K + 2 * Bt * K * H + 2 * Bt * Tq * H)   # intermediates
    vmem_limit = int(min(48 * 2 ** 20, max(32 * 2 ** 20, 4 * step_bytes)))

    grid_spec = pltpu.PrefetchScalarGridSpec(
        num_scalar_prefetch=0,
        grid=grid,
        in_specs=[
            pl.BlockSpec((Bt, Tq, 1), lambda bi, qi: (bi, qi, 0)),    # valid_lens
            pl.BlockSpec((Bt, Tq, Dq), lambda bi, qi: (bi, qi, 0)),   # queries
            pl.BlockSpec((Bt, K, Dk), lambda bi, qi: (bi, 0, 0)),     # keys
            pl.BlockSpec((Bt, K, Dv), lambda bi, qi: (bi, 0, 0)),     # values
            pl.BlockSpec((Dq, H), lambda bi, qi: (0, 0)),             # W_q
            pl.BlockSpec((Dk, H), lambda bi, qi: (0, 0)),             # W_k
            pl.BlockSpec(memory_space=pltpu.MemorySpace.SMEM),        # w_v scalars
        ],
        out_specs=pl.BlockSpec((Bt, Tq, Dv), lambda bi, qi: (bi, qi, 0)),
    )

    out_p = pl.pallas_call(
        functools.partial(additive_attention_kernel,
                          mxu_dtype=mxu_dtype, tanh_dtype=tanh_dtype),
        out_shape=jax.ShapeDtypeStruct((B_pad, Q_pad, Dv), jnp.float32),
        grid_spec=grid_spec,
        compiler_params=pltpu.CompilerParams(
            dimension_semantics=("parallel", "parallel"),
            vmem_limit_bytes=vmem_limit),
    )(vlp, qp, kp, vp, Wq, Wk, wv_flat)

    return out_p[:B, :Q, :]


if __name__ == "__main__":
    key = jax.random.PRNGKey(0)
    kq, kk, kv, kwq, kwk, kwv = jax.random.split(key, 6)

    # shapes implied by the d2l example in the module
    B, Q, K = 2, 1, 10
    Dq, Dk, Dv, H = 20, 2, 4, 8

    queries = jax.random.normal(kq, (B, Q, Dq), dtype=jnp.float32)
    keys_in = jax.random.normal(kk, (B, K, Dk), dtype=jnp.float32)
    values = jax.random.normal(kv, (B, K, Dv), dtype=jnp.float32)
    valid_lens = jnp.array([2, 6], dtype=jnp.int32)

    # deterministic parameters (Linear weights stored as (in, out))
    Wq = jax.random.normal(kwq, (Dq, H), dtype=jnp.float32) * 0.1
    Wk = jax.random.normal(kwk, (Dk, H), dtype=jnp.float32) * 0.1
    wv = jax.random.normal(kwv, (1, H), dtype=jnp.float32) * 0.1

    # pure-JAX reference (mirrors the PyTorch forward exactly, eval mode)
    qh = queries @ Wq
    kh = keys_in @ Wk
    feat = jnp.tanh(qh[:, :, None, :] + kh[:, None, :, :])       # (B, Q, K, H)
    scores = jnp.sum(feat * wv[0], axis=-1)                      # (B, Q, K)
    mask = jnp.arange(K)[None, None, :] < valid_lens[:, None, None]
    scores = jnp.where(mask, scores, jnp.float32(-1e6))
    attn = jax.nn.softmax(scores, axis=-1)
    ref = attn @ values

    # exact path (f32 MXU inputs + f32 tanh): tight tolerance vs reference
    out_f32 = additive_attention(queries, keys_in, values, valid_lens,
                                 Wq, Wk, wv,
                                 mxu_dtype=jnp.float32, tanh_dtype=jnp.float32)
    out_f32 = jax.block_until_ready(out_f32)
    assert out_f32.shape == (B, Q, Dv)
    assert jnp.allclose(out_f32, ref, atol=1e-4, rtol=1e-4), "f32 path mismatch"

    # default fast path (bf16 MXU inputs, bf16 tanh on v6e/v7x): looser tolerance
    out_fast = additive_attention(queries, keys_in, values, valid_lens,
                                  Wq, Wk, wv)
    out_fast = jax.block_until_ready(out_fast)
    assert out_fast.shape == (B, Q, Dv)
    assert jnp.allclose(out_fast, ref, atol=5e-2, rtol=5e-2), "bf16 path mismatch"

    print("KERNEL_OK")
</pallas_src>

<mosaic_0001>
module attributes {stable_mosaic.version = 11 : i64} {
  func.func @additive_attention_kernel(%arg0: i32, %arg1: i32, %arg2: memref<1x1x1xi32, #tpu.memory_space<vmem>>, %arg3: memref<1x1x20xf32, #tpu.memory_space<vmem>>, %arg4: memref<1x10x2xf32, #tpu.memory_space<vmem>>, %arg5: memref<1x10x4xf32, #tpu.memory_space<vmem>>, %arg6: memref<20x8xf32, #tpu.memory_space<vmem>>, %arg7: memref<2x8xf32, #tpu.memory_space<vmem>>, %arg8: memref<8xf32, #tpu.memory_space<smem>>, %arg9: memref<1x1x4xf32, #tpu.memory_space<vmem>>) attributes {dimension_semantics = [#tpu.dimension_semantics<parallel>, #tpu.dimension_semantics<parallel>], iteration_bounds = array<i64: 2, 1>, scalar_prefetch = 0 : i64, scratch_operands = 0 : i64, tpu.core_type = #tpu.core_type<tc>, window_params = [{transform_indices = @transform_0, window_bounds = array<i64: 1, 1, 1>}, {transform_indices = @transform_1, window_bounds = array<i64: 1, 1, 20>}, {transform_indices = @transform_2, window_bounds = array<i64: 1, 10, 2>}, {transform_indices = @transform_3, window_bounds = array<i64: 1, 10, 4>}, {pipeline_mode = #tpu.pipeline_mode<synchronous>, transform_indices = @transform_4, window_bounds = array<i64: 20, 8>}, {pipeline_mode = #tpu.pipeline_mode<synchronous>, transform_indices = @transform_5, window_bounds = array<i64: 2, 8>}, {transform_indices = @transform_6, window_bounds = array<i64: 8>}, {transform_indices = @transform_7, window_bounds = array<i64: 1, 1, 4>}]} {
    %c0 = arith.constant 0 : index
    %c0_0 = arith.constant 0 : index
    %c0_1 = arith.constant 0 : index
    %0 = vector.load %arg3[%c0, %c0_0, %c0_1] : memref<1x1x20xf32, #tpu.memory_space<vmem>>, vector<1x1x20xf32>
    %1 = vector.shape_cast %0 : vector<1x1x20xf32> to vector<1x20xf32>
    %c0_2 = arith.constant 0 : index
    %c0_3 = arith.constant 0 : index
    %2 = vector.load %arg6[%c0_2, %c0_3] : memref<20x8xf32, #tpu.memory_space<vmem>>, vector<20x8xf32>
    %cst = arith.constant dense<0.000000e+00> : vector<1x8xf32>
    %3 = tpu.matmul %1, %2, %cst {dimension_numbers = #tpu.dot_dimension_numbers<[1], [0], [0], [1], [0, 0, 1, 1], [], []>} : vector<1x20xf32>, vector<20x8xf32>, vector<1x8xf32> -> vector<1x8xf32>
    %c0_4 = arith.constant 0 : index
    %c0_5 = arith.constant 0 : index
    %c0_6 = arith.constant 0 : index
    %4 = vector.load %arg4[%c0_4, %c0_5, %c0_6] : memref<1x10x2xf32, #tpu.memory_space<vmem>>, vector<1x10x2xf32>
    %5 = vector.shape_cast %4 : vector<1x10x2xf32> to vector<10x2xf32>
    %c0_7 = arith.constant 0 : index
    %c0_8 = arith.constant 0 : index
    %6 = vector.load %arg7[%c0_7, %c0_8] : memref<2x8xf32, #tpu.memory_space<vmem>>, vector<2x8xf32>
    %cst_9 = arith.constant dense<0.000000e+00> : vector<10x8xf32>
    %7 = tpu.matmul %5, %6, %cst_9 {dimension_numbers = #tpu.dot_dimension_numbers<[1], [0], [0], [1], [0, 0, 1, 1], [], []>} : vector<10x2xf32>, vector<2x8xf32>, vector<10x8xf32> -> vector<10x8xf32>
    %8 = vector.shape_cast %7 : vector<10x8xf32> to vector<1x10x8xf32>
    %9 = tpu.transpose %8, [0, 2, 1] : vector<1x10x8xf32> -> vector<1x8x10xf32>
    %cst_10 = arith.constant 0.000000e+00 : f32
    %10 = vector.broadcast %cst_10 : f32 to vector<1x10xf32>
    %c0_11 = arith.constant 0 : index
    %11 = memref.load %arg8[%c0_11] : memref<8xf32, #tpu.memory_space<smem>>
    %12 = vector.extract_strided_slice %3 {offsets = [0, 0], sizes = [1, 1], strides = [1, 1]} : vector<1x8xf32> to vector<1x1xf32>
    %13 = vector.extract_strided_slice %9 {offsets = [0, 0, 0], sizes = [1, 1, 10], strides = [1, 1, 1]} : vector<1x8x10xf32> to vector<1x1x10xf32>
    %14 = vector.shape_cast %13 : vector<1x1x10xf32> to vector<1x10xf32>
    %15 = vector.broadcast %12 : vector<1x1xf32> to vector<1x10xf32>
    %16 = arith.addf %15, %14 : vector<1x10xf32>
    %17 = math.tanh %16 : vector<1x10xf32>
    %18 = vector.broadcast %11 : f32 to vector<1x10xf32>
    %19 = arith.mulf %18, %17 : vector<1x10xf32>
    %20 = arith.addf %10, %19 : vector<1x10xf32>
    %c1 = arith.constant 1 : index
    %21 = memref.load %arg8[%c1] : memref<8xf32, #tpu.memory_space<smem>>
    %22 = vector.extract_strided_slice %3 {offsets = [0, 1], sizes = [1, 1], strides = [1, 1]} : vector<1x8xf32> to vector<1x1xf32>
    %23 = vector.extract_strided_slice %9 {offsets = [0, 1, 0], sizes = [1, 1, 10], strides = [1, 1, 1]} : vector<1x8x10xf32> to vector<1x1x10xf32>
    %24 = vector.shape_cast %23 : vector<1x1x10xf32> to vector<1x10xf32>
    %25 = vector.broadcast %22 : vector<1x1xf32> to vector<1x10xf32>
    %26 = arith.addf %25, %24 : vector<1x10xf32>
    %27 = math.tanh %26 : vector<1x10xf32>
    %28 = vector.broadcast %21 : f32 to vector<1x10xf32>
    %29 = arith.mulf %28, %27 : vector<1x10xf32>
    %30 = arith.addf %20, %29 : vector<1x10xf32>
    %c2 = arith.constant 2 : index
    %31 = memref.load %arg8[%c2] : memref<8xf32, #tpu.memory_space<smem>>
    %32 = vector.extract_strided_slice %3 {offsets = [0, 2], sizes = [1, 1], strides = [1, 1]} : vector<1x8xf32> to vector<1x1xf32>
    %33 = vector.extract_strided_slice %9 {offsets = [0, 2, 0], sizes = [1, 1, 10], strides = [1, 1, 1]} : vector<1x8x10xf32> to vector<1x1x10xf32>
    %34 = vector.shape_cast %33 : vector<1x1x10xf32> to vector<1x10xf32>
    %35 = vector.broadcast %32 : vector<1x1xf32> to vector<1x10xf32>
    %36 = arith.addf %35, %34 : vector<1x10xf32>
    %37 = math.tanh %36 : vector<1x10xf32>
    %38 = vector.broadcast %31 : f32 to vector<1x10xf32>
    %39 = arith.mulf %38, %37 : vector<1x10xf32>
    %40 = arith.addf %30, %39 : vector<1x10xf32>
    %c3 = arith.constant 3 : index
    %41 = memref.load %arg8[%c3] : memref<8xf32, #tpu.memory_space<smem>>
    %42 = vector.extract_strided_slice %3 {offsets = [0, 3], sizes = [1, 1], strides = [1, 1]} : vector<1x8xf32> to vector<1x1xf32>
    %43 = vector.extract_strided_slice %9 {offsets = [0, 3, 0], sizes = [1, 1, 10], strides = [1, 1, 1]} : vector<1x8x10xf32> to vector<1x1x10xf32>
    %44 = vector.shape_cast %43 : vector<1x1x10xf32> to vector<1x10xf32>
    %45 = vector.broadcast %42 : vector<1x1xf32> to vector<1x10xf32>
    %46 = arith.addf %45, %44 : vector<1x10xf32>
    %47 = math.tanh %46 : vector<1x10xf32>
    %48 = vector.broadcast %41 : f32 to vector<1x10xf32>
    %49 = arith.mulf %48, %47 : vector<1x10xf32>
    %50 = arith.addf %40, %49 : vector<1x10xf32>
    %c4 = arith.constant 4 : index
    %51 = memref.load %arg8[%c4] : memref<8xf32, #tpu.memory_space<smem>>
    %52 = vector.extract_strided_slice %3 {offsets = [0, 4], sizes = [1, 1], strides = [1, 1]} : vector<1x8xf32> to vector<1x1xf32>
    %53 = vector.extract_strided_slice %9 {offsets = [0, 4, 0], sizes = [1, 1, 10], strides = [1, 1, 1]} : vector<1x8x10xf32> to vector<1x1x10xf32>
    %54 = vector.shape_cast %53 : vector<1x1x10xf32> to vector<1x10xf32>
    %55 = vector.broadcast %52 : vector<1x1xf32> to vector<1x10xf32>
    %56 = arith.addf %55, %54 : vector<1x10xf32>
    %57 = math.tanh %56 : vector<1x10xf32>
    %58 = vector.broadcast %51 : f32 to vector<1x10xf32>
    %59 = arith.mulf %58, %57 : vector<1x10xf32>
    %60 = arith.addf %50, %59 : vector<1x10xf32>
    %c5 = arith.constant 5 : index
    %61 = memref.load %arg8[%c5] : memref<8xf32, #tpu.memory_space<smem>>
    %62 = vector.extract_strided_slice %3 {offsets = [0, 5], sizes = [1, 1], strides = [1, 1]} : vector<1x8xf32> to vector<1x1xf32>
    %63 = vector.extract_strided_slice %9 {offsets = [0, 5, 0], sizes = [1, 1, 10], strides = [1, 1, 1]} : vector<1x8x10xf32> to vector<1x1x10xf32>
    %64 = vector.shape_cast %63 : vector<1x1x10xf32> to vector<1x10xf32>
    %65 = vector.broadcast %62 : vector<1x1xf32> to vector<1x10xf32>
    %66 = arith.addf %65, %64 : vector<1x10xf32>
    %67 = math.tanh %66 : vector<1x10xf32>
    %68 = vector.broadcast %61 : f32 to vector<1x10xf32>
    %69 = arith.mulf %68, %67 : vector<1x10xf32>
    %70 = arith.addf %60, %69 : vector<1x10xf32>
    %c6 = arith.constant 6 : index
    %71 = memref.load %arg8[%c6] : memref<8xf32, #tpu.memory_space<smem>>
    %72 = vector.extract_strided_slice %3 {offsets = [0, 6], sizes = [1, 1], strides = [1, 1]} : vector<1x8xf32> to vector<1x1xf32>
    %73 = vector.extract_strided_slice %9 {offsets = [0, 6, 0], sizes = [1, 1, 10], strides = [1, 1, 1]} : vector<1x8x10xf32> to vector<1x1x10xf32>
    %74 = vector.shape_cast %73 : vector<1x1x10xf32> to vector<1x10xf32>
    %75 = vector.broadcast %72 : vector<1x1xf32> to vector<1x10xf32>
    %76 = arith.addf %75, %74 : vector<1x10xf32>
    %77 = math.tanh %76 : vector<1x10xf32>
    %78 = vector.broadcast %71 : f32 to vector<1x10xf32>
    %79 = arith.mulf %78, %77 : vector<1x10xf32>
    %80 = arith.addf %70, %79 : vector<1x10xf32>
    %c7 = arith.constant 7 : index
    %81 = memref.load %arg8[%c7] : memref<8xf32, #tpu.memory_space<smem>>
    %82 = vector.extract_strided_slice %3 {offsets = [0, 7], sizes = [1, 1], strides = [1, 1]} : vector<1x8xf32> to vector<1x1xf32>
    %83 = vector.extract_strided_slice %9 {offsets = [0, 7, 0], sizes = [1, 1, 10], strides = [1, 1, 1]} : vector<1x8x10xf32> to vector<1x1x10xf32>
    %84 = vector.shape_cast %83 : vector<1x1x10xf32> to vector<1x10xf32>
    %85 = vector.broadcast %82 : vector<1x1xf32> to vector<1x10xf32>
    %86 = arith.addf %85, %84 : vector<1x10xf32>
    %87 = math.tanh %86 : vector<1x10xf32>
    %88 = vector.broadcast %81 : f32 to vector<1x10xf32>
    %89 = arith.mulf %88, %87 : vector<1x10xf32>
    %90 = arith.addf %80, %89 : vector<1x10xf32>
    %c0_12 = arith.constant 0 : index
    %c0_13 = arith.constant 0 : index
    %c0_14 = arith.constant 0 : index
    %91 = vector.load %arg2[%c0_12, %c0_13, %c0_14] : memref<1x1x1xi32, #tpu.memory_space<vmem>>, vector<1x1x1xi32>
    %92 = vector.shape_cast %91 : vector<1x1x1xi32> to vector<1x1xi32>
    %93 = tpu.iota {dimensions = array<i32: 1>} : vector<1x10xi32>
    %94 = vector.broadcast %92 : vector<1x1xi32> to vector<1x10xi32>
    %95 = arith.cmpi slt, %93, %94 : vector<1x10xi32>
    %cst_15 = arith.constant -1.000000e+06 : f32
    %96 = vector.broadcast %cst_15 : f32 to vector<1x10xf32>
    %97 = arith.select %95, %90, %96 : vector<1x10xi1>, vector<1x10xf32>
    %cst_16 = arith.constant dense<0xFF800000> : vector<1xf32>
    %98 = vector.multi_reduction <maximumf>, %97, %cst_16 [1] : vector<1x10xf32> to vector<1xf32>
    %99 = vector.shape_cast %98 : vector<1xf32> to vector<1x1xf32>
    %100 = vector.broadcast %99 : vector<1x1xf32> to vector<1x10xf32>
    %101 = arith.subf %97, %100 : vector<1x10xf32>
    %102 = math.exp %101 : vector<1x10xf32>
    %cst_17 = arith.constant dense<0.000000e+00> : vector<1xf32>
    %103 = vector.multi_reduction <add>, %102, %cst_17 [1] : vector<1x10xf32> to vector<1xf32>
    %104 = vector.shape_cast %103 : vector<1xf32> to vector<1x1xf32>
    %105 = tpu.reciprocal %104 {approx = true} : vector<1x1xf32> -> vector<1x1xf32>
    %106 = arith.mulf %104, %105 : vector<1x1xf32>
    %cst_18 = arith.constant 2.000000e+00 : f32
    %107 = vector.broadcast %cst_18 : f32 to vector<1x1xf32>
    %108 = arith.subf %107, %106 : vector<1x1xf32>
    %109 = arith.mulf %105, %108 : vector<1x1xf32>
    %110 = vector.broadcast %109 : vector<1x1xf32> to vector<1x10xf32>
    %111 = arith.mulf %102, %110 : vector<1x10xf32>
    %112 = vector.shape_cast %111 : vector<1x10xf32> to vector<1x1x10xf32>
    %c0_19 = arith.constant 0 : index
    %c0_20 = arith.constant 0 : index
    %c0_21 = arith.constant 0 : index
    %113 = vector.load %arg5[%c0_19, %c0_20, %c0_21] : memref<1x10x4xf32, #tpu.memory_space<vmem>>, vector<1x10x4xf32>
    "tpu.trace_start"() <{level = 10 : i32, message = "bqk,bkd->bqd"}> : () -> ()
    %cst_22 = arith.constant dense<0.000000e+00> : vector<1x1x4xf32>
    %114 = tpu.matmul %112, %113, %cst_22 {dimension_numbers = #tpu.dot_dimension_numbers<[2], [1], [1], [2], [0, 0, 0, 1, 1, 2], [0], [0]>} : vector<1x1x10xf32>, vector<1x10x4xf32>, vector<1x1x4xf32> -> vector<1x1x4xf32>
    "tpu.trace_stop"() : () -> ()
    %c0_23 = arith.constant 0 : index
    %c0_24 = arith.constant 0 : index
    %c0_25 = arith.constant 0 : index
    %115 = vector.load %arg9[%c0_23, %c0_24, %c0_25] : memref<1x1x4xf32, #tpu.memory_space<vmem>>, vector<1x1x4xf32>
    tpu.vector_store %arg9[%c0_23, %c0_24, %c0_25], %114 {strides = array<i32>} : memref<1x1x4xf32, #tpu.memory_space<vmem>>, vector<1x1x4xf32>,
    return
  }
  func.func @transform_0(%arg0: i32, %arg1: i32) -> (i32, i32, i32) {
    %c0_i32 = arith.constant 0 : i32
    %c0_i32_0 = arith.constant 0 : i32
    return %arg0, %arg1, %c0_i32 : i32, i32, i32
  }
  func.func @transform_1(%arg0: i32, %arg1: i32) -> (i32, i32, i32) {
    %c0_i32 = arith.constant 0 : i32
    %c0_i32_0 = arith.constant 0 : i32
    return %arg0, %arg1, %c0_i32 : i32, i32, i32
  }
  func.func @transform_2(%arg0: i32, %arg1: i32) -> (i32, i32, i32) {
    %c0_i32 = arith.constant 0 : i32
    %c0_i32_0 = arith.constant 0 : i32
    %c0_i32_1 = arith.constant 0 : i32
    return %arg0, %c0_i32, %c0_i32_0 : i32, i32, i32
  }
  func.func @transform_3(%arg0: i32, %arg1: i32) -> (i32, i32, i32) {
    %c0_i32 = arith.constant 0 : i32
    %c0_i32_0 = arith.constant 0 : i32
    %c0_i32_1 = arith.constant 0 : i32
    return %arg0, %c0_i32, %c0_i32_0 : i32, i32, i32
  }
  func.func @transform_4(%arg0: i32, %arg1: i32) -> (i32, i32) {
    %c0_i32 = arith.constant 0 : i32
    %c0_i32_0 = arith.constant 0 : i32
    %c0_i32_1 = arith.constant 0 : i32
    return %c0_i32, %c0_i32_0 : i32, i32
  }
  func.func @transform_5(%arg0: i32, %arg1: i32) -> (i32, i32) {
    %c0_i32 = arith.constant 0 : i32
    %c0_i32_0 = arith.constant 0 : i32
    %c0_i32_1 = arith.constant 0 : i32
    return %c0_i32, %c0_i32_0 : i32, i32
  }
  func.func @transform_6(%arg0: i32, %arg1: i32) -> i32 {
    %c0_i32 = arith.constant 0 : i32
    %c0_i32_0 = arith.constant 0 : i32
    return %c0_i32 : i32
  }
  func.func @transform_7(%arg0: i32, %arg1: i32) -> (i32, i32, i32) {
    %c0_i32 = arith.constant 0 : i32
    %c0_i32_0 = arith.constant 0 : i32
    return %arg0, %arg1, %c0_i32 : i32, i32, i32
  }
}

</mosaic_0001>

<llo_original>
// kernel: tpu_custom_call.1
$region0: #{tpu_custom_call.1}
  #allocation0 [shape = 'u32[]', space=smem, size = 0x4, offset = 0x4, fixed_abs, tag = 'smem constant byte address 0x4 - core index']
  #allocation1 [shape = 'u32[72,128]{1,0:T(1,128)}', space=vmem, size = 0x9000, scoped, tag = 'internal scratch']
  %s0 = inlined_call_operand.vmem [shape: s32[2,1,1], index: 0, kind: input, shape index: {}]
  %s1 = inlined_call_operand.vmem [shape: f32[2,1,20], index: 1, kind: input, shape index: {}]
  %s2 = inlined_call_operand.vmem [shape: f32[2,10,2], index: 2, kind: input, shape index: {}]
  %s3 = inlined_call_operand.vmem [shape: f32[2,10,4], index: 3, kind: input, shape index: {}]
  %s4 = inlined_call_operand.vmem [shape: f32[20,8], index: 4, kind: input, shape index: {}]
  %s5 = inlined_call_operand.vmem [shape: f32[2,8], index: 5, kind: input, shape index: {}]
  %s6 = inlined_call_operand.vmem [shape: f32[8], index: 6, kind: input, shape index: {}]
  %s7 = inlined_call_operand.hbm [shape: f32[2,1,4], index: 7, kind: output, shape index: {}]
  %s8 = sld [smem:[#allocation0]]
  $region65: #{tpu_custom_call.1} parent=0
    _
  %s10 = ssub.s32 1, %s8
  %s11 = scalar_select 0, %s10, %s8
  $region1: #{tpu_custom_call.1} parent=0
    #allocation2 [shape = 'u8[512]{0}', space=smem, size = 0x200, scoped, tag = 'input window, operand 6, single buffered']
    #allocation3 [shape = 's32[2]{0}', space=sflag, size = 0x8, scoped, tag = 'scoped memory for tpu_custom_call.1']
    #allocation4 [shape = 's32[2]{0}', space=sflag, size = 0x8, scoped, tag = 'scoped memory for tpu_custom_call.1']
    #allocation5 [shape = 'u8[1024]{0}', space=vmem, size = 0x400, scoped, tag = 'output window, operand 0']
    %12 = vsyncpa [#allocation4], 0
    %13 = vsyncpa [#allocation3], 0
    %s14 = scalar_lea.sflag [#allocation3], 1
    %15 = vsyncpa %s14, 0
    loop: start=0, step=1, limit=4
    $region2: #{tpu_custom_call.1} parent=1 // loop_pre_header
      _
    $region3: #{tpu_custom_call.1} parent=1 // loop_header
      %s17 = sphi 0, %s21
      %p18 = scmp.ge.s32.totalorder %s17, 4
      %s24 = sphi 0, %s36
      %s25 = sphi 0, %s32
      %s26 = sphi 0, %s24
      %s27 = sphi 0, %s25
      %s28 = sphi 0, %s26
      %s29 = sphi 0, %s27
      %s41 = sphi 0, %s43
      %s44 = sphi 0, %s41
      %s45 = sphi 0, %s44
      %s61 = sphi 0, %s45
      %s69 = sphi 0, %s71
      %s72 = sphi 0, %s69
      %s73 = sphi 0, %s72
      %s89 = sphi 0, %s73
      %s95 = sphi 0, %s97
      %s98 = sphi 0, %s95
      %s99 = sphi 0, %s98
      %s115 = sphi 0, %s99
      %s121 = sphi 0, %s123
      %s124 = sphi 0, %s121
      %s125 = sphi 0, %s124
      %s141 = sphi 0, %s125
      %s145 = sphi 0, %s145
      %s147 = sphi 0, %s145
      %s148 = sphi 0, %s147
      %s162 = sphi 0, %s148
      %s166 = sphi 0, %s166
      %s168 = sphi 0, %s166
      %s169 = sphi 0, %s168
      %s183 = sphi 0, %s169
      %s187 = sphi 0, %s187
      %s189 = sphi 0, %s187
      %s190 = sphi 0, %s189
      %s204 = sphi 0, %s190
      %s212 = sphi 0, %s214
      %s215 = sphi 0, %s212
      %s216 = sphi 0, %s215
      %s232 = sphi 0, %s216
    $region4: #{tpu_custom_call.1} parent=1 // loop_header_branch
      %20 = sbr.rel (%p18) target = $region8
    $region5: #{tpu_custom_call.1} parent=1 // loop_body
      %s22 = ssub.s32 %s17, 1
      %s23 = ssub.s32 %s17, 2
      %s30 = sadd.s32 1, %s25
      %p31 = scmp.ge.s32.totalorder %s30, 1
      %s32 = scalar_select %p31, 0, %s30
      %s33 = sadd.s32 1, %s24
      %s34 = scalar_select %p31, %s33, %s24
      %p35 = scmp.ge.s32.totalorder %s34, 2
      %s36 = scalar_select %p35, 0, %s34
      %s37 = ssub.s32 %s24, %s36
      %s38 = ssub.s32 %s25, %s32
      %s39 = sor.u32 %s37, %s38
      %p40 = scmp.eq.s32.totalorder %s39, 0
      %s42 = sadd.s32 %s41, 1
      %s43 = scalar_select %p40, %s41, %s42
      %p46 = pneg %p40
      %p47 = scmp.eq.s32.totalorder %s17, 1
      %p48 = por %p46, %p47
      %p49 = scmp.ne.s32.totalorder %s41, %s44
      %p50 = scmp.eq.s32.totalorder %s17, 0
      %p51 = por %p49, %p50
      %p52 = scmp.ne.s32.totalorder %s41, %s44
      %p53 = scmp.eq.s32.totalorder %s22, 1
      %p54 = por %p52, %p53
      %p55 = scmp.ne.s32.totalorder %s44, %s45
      %p56 = scmp.eq.s32.totalorder %s22, 0
      %p57 = por %p55, %p56
      %p58 = scmp.ne.s32.totalorder %s44, %s45
      %p59 = scmp.eq.s32.totalorder %s23, 1
      %p60 = por %p58, %p59
      %p62 = scmp.ne.s32.totalorder %s45, %s61
      %p63 = scmp.eq.s32.totalorder %s23, 0
      %p64 = por %p62, %p63
      %s65 = ssub.s32 %s24, %s36
      %s66 = ssub.s32 %s25, %s32
      %s67 = sor.u32 %s65, %s66
      %p68 = scmp.eq.s32.totalorder %s67, 0
      %s70 = sadd.s32 %s69, 1
      %s71 = scalar_select %p68, %s69, %s70
      %p74 = pneg %p68
      %p75 = scmp.eq.s32.totalorder %s17, 1
      %p76 = por %p74, %p75
      %p77 = scmp.ne.s32.totalorder %s69, %s72
      %p78 = scmp.eq.s32.totalorder %s17, 0
      %p79 = por %p77, %p78
      %p80 = scmp.ne.s32.totalorder %s69, %s72
      %p81 = scmp.eq.s32.totalorder %s22, 1
      %p82 = por %p80, %p81
      %p83 = scmp.ne.s32.totalorder %s72, %s73
      %p84 = scmp.eq.s32.totalorder %s22, 0
      %p85 = por %p83, %p84
      %p86 = scmp.ne.s32.totalorder %s72, %s73
      %p87 = scmp.eq.s32.totalorder %s23, 1
      %p88 = por %p86, %p87
      %p90 = scmp.ne.s32.totalorder %s73, %s89
      %p91 = scmp.eq.s32.totalorder %s23, 0
      %p92 = por %p90, %p91
      %s93 = ssub.s32 %s24, %s36
      %p94 = scmp.eq.s32.totalorder %s93, 0
      %s96 = sadd.s32 %s95, 1
      %s97 = scalar_select %p94, %s95, %s96
      %p100 = pneg %p94
      %p101 = scmp.eq.s32.totalorder %s17, 1
      %p102 = por %p100, %p101
      %p103 = scmp.ne.s32.totalorder %s95, %s98
      %p104 = scmp.eq.s32.totalorder %s17, 0
      %p105 = por %p103, %p104
      %p106 = scmp.ne.s32.totalorder %s95, %s98
      %p107 = scmp.eq.s32.totalorder %s22, 1
      %p108 = por %p106, %p107
      %p109 = scmp.ne.s32.totalorder %s98, %s99
      %p110 = scmp.eq.s32.totalorder %s22, 0
      %p111 = por %p109, %p110
      %p112 = scmp.ne.s32.totalorder %s98, %s99
      %p113 = scmp.eq.s32.totalorder %s23, 1
      %p114 = por %p112, %p113
      %p116 = scmp.ne.s32.totalorder %s99, %s115
      %p117 = scmp.eq.s32.totalorder %s23, 0
      %p118 = por %p116, %p117
      %s119 = ssub.s32 %s24, %s36
      %p120 = scmp.eq.s32.totalorder %s119, 0
      %s122 = sadd.s32 %s121, 1
      %s123 = scalar_select %p120, %s121, %s122
      %p126 = pneg %p120
      %p127 = scmp.eq.s32.totalorder %s17, 1
      %p128 = por %p126, %p127
      %p129 = scmp.ne.s32.totalorder %s121, %s124
      %p130 = scmp.eq.s32.totalorder %s17, 0
      %p131 = por %p129, %p130
      %p132 = scmp.ne.s32.totalorder %s121, %s124
      %p133 = scmp.eq.s32.totalorder %s22, 1
      %p134 = por %p132, %p133
      %p135 = scmp.ne.s32.totalorder %s124, %s125
      %p136 = scmp.eq.s32.totalorder %s22, 0
      %p137 = por %p135, %p136
      %p138 = scmp.ne.s32.totalorder %s124, %s125
      %p139 = scmp.eq.s32.totalorder %s23, 1
      %p140 = por %p138, %p139
      %p142 = scmp.ne.s32.totalorder %s125, %s141
      %p143 = scmp.eq.s32.totalorder %s23, 0
      %p144 = por %p142, %p143
      %s146 = sadd.s32 %s145, 1
      %p149 = scmp.eq.s32.totalorder %s17, 1
      %p150 = scmp.ne.s32.totalorder %s145, %s147
      %p151 = scmp.eq.s32.totalorder %s17, 0
      %p152 = por %p150, %p151
      %p153 = scmp.ne.s32.totalorder %s145, %s147
      %p154 = scmp.eq.s32.totalorder %s22, 1
      %p155 = por %p153, %p154
      %p156 = scmp.ne.s32.totalorder %s147, %s148
      %p157 = scmp.eq.s32.totalorder %s22, 0
      %p158 = por %p156, %p157
      %p159 = scmp.ne.s32.totalorder %s147, %s148
      %p160 = scmp.eq.s32.totalorder %s23, 1
      %p161 = por %p159, %p160
      %p163 = scmp.ne.s32.totalorder %s148, %s162
      %p164 = scmp.eq.s32.totalorder %s23, 0
      %p165 = por %p163, %p164
      %s167 = sadd.s32 %s166, 1
      %p170 = scmp.eq.s32.totalorder %s17, 1
      %p171 = scmp.ne.s32.totalorder %s166, %s168
      %p172 = scmp.eq.s32.totalorder %s17, 0
      %p173 = por %p171, %p172
      %p174 = scmp.ne.s32.totalorder %s166, %s168
      %p175 = scmp.eq.s32.totalorder %s22, 1
      %p176 = por %p174, %p175
      %p177 = scmp.ne.s32.totalorder %s168, %s169
      %p178 = scmp.eq.s32.totalorder %s22, 0
      %p179 = por %p177, %p178
      %p180 = scmp.ne.s32.totalorder %s168, %s169
      %p181 = scmp.eq.s32.totalorder %s23, 1
      %p182 = por %p180, %p181
      %p184 = scmp.ne.s32.totalorder %s169, %s183
      %p185 = scmp.eq.s32.totalorder %s23, 0
      %p186 = por %p184, %p185
      %s188 = sadd.s32 %s187, 1
      %p191 = scmp.eq.s32.totalorder %s17, 1
      %p192 = scmp.ne.s32.totalorder %s187, %s189
      %p193 = scmp.eq.s32.totalorder %s17, 0
      %p194 = por %p192, %p193
      %p195 = scmp.ne.s32.totalorder %s187, %s189
      %p196 = scmp.eq.s32.totalorder %s22, 1
      %p197 = por %p195, %p196
      %p198 = scmp.ne.s32.totalorder %s189, %s190
      %p199 = scmp.eq.s32.totalorder %s22, 0
      %p200 = por %p198, %p199
      %p201 = scmp.ne.s32.totalorder %s189, %s190
      %p202 = scmp.eq.s32.totalorder %s23, 1
      %p203 = por %p201, %p202
      %p205 = scmp.ne.s32.totalorder %s190, %s204
      %p206 = scmp.eq.s32.totalorder %s23, 0
      %p207 = por %p205, %p206
      %s208 = ssub.s32 %s24, %s36
      %s209 = ssub.s32 %s25, %s32
      %s210 = sor.u32 %s208, %s209
      %p211 = scmp.eq.s32.totalorder %s210, 0
      %s213 = sadd.s32 %s212, 1
      %s214 = scalar_select %p211, %s212, %s213
      %p217 = pneg %p211
      %p218 = scmp.eq.s32.totalorder %s17, 1
      %p219 = por %p217, %p218
      %p220 = scmp.ne.s32.totalorder %s212, %s215
      %p221 = scmp.eq.s32.totalorder %s17, 0
      %p222 = por %p220, %p221
      %p223 = scmp.ne.s32.totalorder %s212, %s215
      %p224 = scmp.eq.s32.totalorder %s22, 1
      %p225 = por %p223, %p224
      %p226 = scmp.ne.s32.totalorder %s215, %s216
      %p227 = scmp.eq.s32.totalorder %s22, 0
      %p228 = por %p226, %p227
      %p229 = scmp.ne.s32.totalorder %s215, %s216
      %p230 = scmp.eq.s32.totalorder %s23, 1
      %p231 = por %p229, %p230
      %p233 = scmp.ne.s32.totalorder %s216, %s232
      %p234 = scmp.eq.s32.totalorder %s23, 0
      %p235 = por %p233, %p234
      %p236 = scmp.le.s32.totalorder 1, %s17
      %p237 = scmp.lt.s32.totalorder %s17, 3
      %p238 = pnand %p236, %p237
      %p239 = pneg %p238
      // Predicated region
      $region9: #{tpu_custom_call.1} parent=5 // pred_check
        _
      $region10: #{tpu_custom_call.1} parent=5 // pred_check_branch
        %241 = sbr.rel (%p238) target = $region12
      $region11: #{tpu_custom_call.1} parent=5 // pred_region
        %s242 = ssub.s32 %s17, 1
        // Predicated region
        $region13: #{tpu_custom_call.1} parent=11 // pred_check
          %p243 = pneg %p158
        $region14: #{tpu_custom_call.1} parent=11 // pred_check_branch
          %245 = sbr.rel (%p243) target = $region16
        $region15: #{tpu_custom_call.1} parent=11 // pred_region
          _
        $region16: #{tpu_custom_call.1} parent=11 // pred_fallthru
          _
        // Predicated region
        $region17: #{tpu_custom_call.1} parent=11 // pred_check
          %p246 = pneg %p179
        $region18: #{tpu_custom_call.1} parent=11 // pred_check_branch
          %248 = sbr.rel (%p246) target = $region20
        $region19: #{tpu_custom_call.1} parent=11 // pred_region
          _
        $region20: #{tpu_custom_call.1} parent=11 // pred_fallthru
          _
        // Predicated region
        $region21: #{tpu_custom_call.1} parent=11 // pred_check
          %p249 = pneg %p200
        $region22: #{tpu_custom_call.1} parent=11 // pred_check_branch
          %251 = sbr.rel (%p249) target = $region24
        $region23: #{tpu_custom_call.1} parent=11 // pred_region
          %253 = vsyncadd [#allocation4], 0
          %s255 = sshll.u32 %s6, 4
          %s256 = int_to_ptr.vmem [resolvable:$true] %s255
          %258 = dma.vmem_to_smem %s256, 16, [#allocation2], [#allocation4]
        $region24: #{tpu_custom_call.1} parent=11 // pred_fallthru
          _
      $region12: #{tpu_custom_call.1} parent=5 // pred_fallthru
        _
      %p259 = scmp.lt.s32.totalorder %s17, 2
      // Predicated region
      $region25: #{tpu_custom_call.1} parent=5 // pred_check
        %p260 = pneg %p259
      $region26: #{tpu_custom_call.1} parent=5 // pred_check_branch
        %262 = sbr.rel (%p260) target = $region28
      $region27: #{tpu_custom_call.1} parent=5 // pred_region
        // Predicated region
        $region29: #{tpu_custom_call.1} parent=27 // pred_check
          %p263 = pneg %p51
        $region30: #{tpu_custom_call.1} parent=27 // pred_check_branch
          %265 = sbr.rel (%p263) target = $region32
        $region31: #{tpu_custom_call.1} parent=27 // pred_region
          %p266 = scmp.lt.s32.totalorder %s24, 1
          %s267 = scalar_select %p266, %s24, 1
          %p268 = scmp.lt.s32.totalorder %s25, 0
          %s269 = scalar_select %p268, %s25, 0
          %s270 = sadd.s32 %s269, %s267
          %s271 = scalar_lea.vmem %s0, %s270
        $region32: #{tpu_custom_call.1} parent=27 // pred_fallthru
          _
        // Predicated region
        $region33: #{tpu_custom_call.1} parent=27 // pred_check
          %p272 = pneg %p79
        $region34: #{tpu_custom_call.1} parent=27 // pred_check_branch
          %274 = sbr.rel (%p272) target = $region36
        $region35: #{tpu_custom_call.1} parent=27 // pred_region
          %p275 = scmp.lt.s32.totalorder %s24, 1
          %s276 = scalar_select %p275, %s24, 1
          %p277 = scmp.lt.s32.totalorder %s25, 0
          %s278 = scalar_select %p277, %s25, 0
          %s279 = sadd.s32 %s278, %s276
          %s280 = scalar_lea.vmem %s1, %s279
        $region36: #{tpu_custom_call.1} parent=27 // pred_fallthru
          _
        // Predicated region
        $region37: #{tpu_custom_call.1} parent=27 // pred_check
          %p281 = pneg %p105
        $region38: #{tpu_custom_call.1} parent=27 // pred_check_branch
          %283 = sbr.rel (%p281) target = $region40
        $region39: #{tpu_custom_call.1} parent=27 // pred_region
          %p284 = scmp.lt.s32.totalorder %s24, 1
          %s285 = scalar_select %p284, %s24, 1
          %s286 = smul.addr %s285, 2
          %s287 = smul.addr %s286, 8
          %s288 = scalar_lea.vmem %s2, %s287
        $region40: #{tpu_custom_call.1} parent=27 // pred_fallthru
          _
        // Predicated region
        $region41: #{tpu_custom_call.1} parent=27 // pred_check
          %p289 = pneg %p131
        $region42: #{tpu_custom_call.1} parent=27 // pred_check_branch
          %291 = sbr.rel (%p289) target = $region44
        $region43: #{tpu_custom_call.1} parent=27 // pred_region
          %p292 = scmp.lt.s32.totalorder %s24, 1
          %s293 = scalar_select %p292, %s24, 1
          %s294 = smul.addr %s293, 2
          %s295 = smul.addr %s294, 8
          %s296 = scalar_lea.vmem %s3, %s295
        $region44: #{tpu_custom_call.1} parent=27 // pred_fallthru
          _
      $region28: #{tpu_custom_call.1} parent=5 // pred_fallthru
        _
      %p297 = scmp.le.s32.totalorder 1, %s17
      %p298 = scmp.lt.s32.totalorder %s17, 3
      %p299 = pnand %p297, %p298
      %p300 = pneg %p299
      // Predicated region
      $region45: #{tpu_custom_call.1} parent=5 // pred_check
        _
      $region46: #{tpu_custom_call.1} parent=5 // pred_check_branch
        %302 = sbr.rel (%p299) target = $region48
      $region47: #{tpu_custom_call.1} parent=5 // pred_region
        %s303 = ssub.s32 %s17, 1
        // Predicated region
        $region49: #{tpu_custom_call.1} parent=47 // pred_check
          %p304 = pneg %p200
        $region50: #{tpu_custom_call.1} parent=47 // pred_check_branch
          %306 = sbr.rel (%p304) target = $region52
        $region51: #{tpu_custom_call.1} parent=47 // pred_region
          %308 = dma.done [#allocation4], 16
        $region52: #{tpu_custom_call.1} parent=47 // pred_fallthru
          _
        %309 = sfence
        %p310 = scmp.lt.s32.totalorder %s26, 1
        %s311 = scalar_select %p310, %s26, 1
        %p312 = scmp.lt.s32.totalorder %s27, 0
        %s313 = scalar_select %p312, %s27, 0
        %s314 = sadd.s32 %s313, %s311
        %s315 = scalar_lea.vmem %s0, %s314
        %p316 = pneg %p57
        %p317 = pneg %p54
        %p318 = scmp.lt.s32.totalorder %s26, 1
        %s319 = scalar_select %p318, %s26, 1
        %p320 = scmp.lt.s32.totalorder %s27, 0
        %s321 = scalar_select %p320, %s27, 0
        %s322 = sadd.s32 %s321, %s319
        %s323 = scalar_lea.vmem %s1, %s322
        %p324 = pneg %p85
        %p325 = pneg %p82
        %p326 = scmp.lt.s32.totalorder %s26, 1
        %s327 = scalar_select %p326, %s26, 1
        %s328 = smul.addr %s327, 2
        %s329 = smul.addr %s328, 8
        %s330 = scalar_lea.vmem %s2, %s329
        %p331 = pneg %p111
        %p332 = pneg %p108
        %p333 = scmp.lt.s32.totalorder %s26, 1
        %s334 = scalar_select %p333, %s26, 1
        %s335 = smul.addr %s334, 2
        %s336 = smul.addr %s335, 8
        %s337 = scalar_lea.vmem %s3, %s336
        %p338 = pneg %p137
        %p339 = pneg %p134
        %p340 = pneg %p158
        %p341 = pneg %p155
        %p342 = pneg %p179
        %p343 = pneg %p176
        %p344 = pneg %p200
        %p345 = pneg %p197
        %p346 = pneg %p228
        %p347 = pneg %p225
        %s348 = sand.u32 %s215, 1
        %s349 = scalar_lea.sflag [#allocation3], %s348
        %s350 = sand.u32 %s215, 1
        %s351 = scalar_lea.vmem [#allocation5], %s350
        %p352 = scmp.lt.s32.totalorder %s26, 1
        %s353 = scalar_select %p352, %s26, 1
        %p354 = scmp.lt.s32.totalorder %s27, 0
        %s355 = scalar_select %p354, %s27, 0
        %s356 = sadd.s32 %s355, %s353
        %s357 = scalar_lea.vmem %s0, %s356
        %p358 = scmp.lt.s32.totalorder %s26, 1
        %s359 = scalar_select %p358, %s26, 1
        %p360 = scmp.lt.s32.totalorder %s27, 0
        %s361 = scalar_select %p360, %s27, 0
        %s362 = sadd.s32 %s361, %s359
        %s363 = scalar_lea.vmem %s1, %s362
        %p364 = scmp.lt.s32.totalorder %s26, 1
        %s365 = scalar_select %p364, %s26, 1
        %s366 = smul.addr %s365, 2
        %s367 = smul.addr %s366, 8
        %s368 = scalar_lea.vmem %s2, %s367
        %p369 = scmp.lt.s32.totalorder %s26, 1
        %s370 = scalar_select %p369, %s26, 1
        %s371 = smul.addr %s370, 2
        %s372 = smul.addr %s371, 8
        %s373 = scalar_lea.vmem %s3, %s372
        %v374 = vld [vmem:[%s363] sm:$0x1]
        %v375 = vld [vmem:[%s4] sm:$0xff]
        %v376 = vld [vmem:[%s4 + $0x8] sm:$0xff]
        %v377 = vld [vmem:[%s4 + $0x10] sm:$0xf]
        %vm378 = vcmask 162816
        %v380 = vsel %vm378, %v374, 0
        %vm382 = vcmask 1043456
        %v384 = vsel %vm382, %v377, 0
        %386 = vmatpush.msra.mxu0 0.0
        %387 = vmatpush.msra.mxu0 0.0
        %388 = vmatpush.msra.mxu0 0.0
        %389 = vmatpush.msra.mxu0 0.0
        %390 = vmatpush.msra.mxu0 0.0
        %391 = vmatpush.msra.mxu0 0.0
        %392 = vmatpush.msra.mxu0 0.0
        %393 = vmatpush.msra.mxu0 0.0
        %394 = vmatpush.msra.mxu0 0.0
        %395 = vmatpush.msra.mxu0 0.0
        %396 = vmatpush.msra.mxu0 0.0
        %397 = vmatpush.msra.mxu0 0.0
        %398 = vmatpush.msra.mxu0 0.0
        %399 = vmatpush.msra.mxu0 %v384
        %400 = vmatpush.msra.mxu0 %v376
        %401 = vmatpush.msra.mxu0 %v375
        %402 = vmatmul.f32.gmra.mxu0 %v380
        %v403 = vpop.f32.mrf.mxu0
        %v404 = vadd.f32 0.0, %v403
        %405 = vdwg.mxu0
        %v406 = vld [vmem:[%s368] sm:$0xff]
        %v407 = vld [vmem:[%s368 + $0x8] sm:$0x3]
        %v408 = vld [vmem:[%s5] sm:$0x3]
        %vm409 = vcmask 15360
        %v411 = vsel %vm409, %v406, 0
        %v414 = vsel %vm409, %v407, 0
        %vm416 = vcmask 1041408
        %v418 = vsel %vm416, %v408, 0
        %420 = vmatpush.msra.mxu0 0.0
        %421 = vmatpush.msra.mxu0 0.0
        %422 = vmatpush.msra.mxu0 0.0
        %423 = vmatpush.msra.mxu0 0.0
        %424 = vmatpush.msra.mxu0 0.0
        %425 = vmatpush.msra.mxu0 0.0
        %426 = vmatpush.msra.mxu0 0.0
        %427 = vmatpush.msra.mxu0 0.0
        %428 = vmatpush.msra.mxu0 0.0
        %429 = vmatpush.msra.mxu0 0.0
        %430 = vmatpush.msra.mxu0 0.0
        %431 = vmatpush.msra.mxu0 0.0
        %432 = vmatpush.msra.mxu0 0.0
        %433 = vmatpush.msra.mxu0 0.0
        %434 = vmatpush.msra.mxu0 0.0
        %435 = vmatpush.msra.mxu0 %v418
        %436 = vmatmul.f32.gmra.mxu0 %v411
        %v437 = vpop.f32.mrf.mxu0
        %v438 = vadd.f32 0.0, %v437
        %439 = vmatmul.f32.gmra.mxu0 %v414
        %v440 = vpop.f32.mrf.mxu0
        %v441 = vadd.f32 0.0, %v440
        %442 = vdwg.mxu0
        %443 = vxpose.xlu0.b32.start [1/16] %v438, 128
        %444 = vxpose.xlu0.b32.cont [2/16] %v441, 128
        %445 = vxpose.xlu0.b32.cont [3/16] 0.0, 128
        %446 = vxpose.xlu0.b32.cont [4/16] 0.0, 128
        %447 = vxpose.xlu0.b32.cont [5/16] 0.0, 128
        %448 = vxpose.xlu0.b32.cont [6/16] 0.0, 128
        %449 = vxpose.xlu0.b32.cont [7/16] 0.0, 128
        %450 = vxpose.xlu0.b32.cont [8/16] 0.0, 128
        %451 = vxpose.xlu0.b32.cont [9/16] 0.0, 128
        %452 = vxpose.xlu0.b32.cont [10/16] 0.0, 128
        %453 = vxpose.xlu0.b32.cont [11/16] 0.0, 128
        %454 = vxpose.xlu0.b32.cont [12/16] 0.0, 128
        %455 = vxpose.xlu0.b32.cont [13/16] 0.0, 128
        %456 = vxpose.xlu0.b32.cont [14/16] 0.0, 128
        %457 = vxpose.xlu0.b32.cont [15/16] 0.0, 128
        %458 = vxpose.xlu0.b32.end [16/16] 0.0, 128
        %v459 = vpop.trf.xlu0
        %v460 = vpop.trf.xlu0
        %v461 = vpop.trf.xlu0
        %v462 = vpop.trf.xlu0
        %v463 = vpop.trf.xlu0
        %v464 = vpop.trf.xlu0
        %v465 = vpop.trf.xlu0
        %v466 = vpop.trf.xlu0
        %v467 = vpop.trf.xlu0
        %v468 = vpop.trf.xlu0
        %v469 = vpop.trf.xlu0
        %v470 = vpop.trf.xlu0
        %v471 = vpop.trf.xlu0
        %v472 = vpop.trf.xlu0
        %v473 = vpop.trf.xlu0
        %v474 = vpop.trf.xlu0
        %s475 = sld [smem:[#allocation2]]
        %477 = vset.pattern.permute.xlu0 0
        %478 = vperm.xlu0 %477, %v404
        %v479 = vpop.permute.xlu0 %478
        %v481 = vadd.f32 %v479, %v459
        %v482 = vtanh.pop %v481
        %v483 = vstv %s475
        %v484 = vmul.f32 %v483, %v482
        %v485 = vadd.f32 %v484, 0.0
        %s486 = sld [smem:[#allocation2 + $0x1]]
        %487 = vset.pattern.permute.xlu0 1
        %488 = vperm.xlu0 %487, %v404
        %v489 = vpop.permute.xlu0 %488
        %v492 = vrot.slane %v459, 1
        %v494 = vadd.f32 %v489, %v492
        %v495 = vtanh.pop %v494
        %v496 = vstv %s486
        %v497 = vmul.f32 %v496, %v495
        %v498 = vadd.f32 %v485, %v497
        %s499 = sld [smem:[#allocation2 + $0x2]]
        %500 = vset.pattern.permute.xlu0 2
        %501 = vperm.xlu0 %500, %v404
        %v502 = vpop.permute.xlu0 %501
        %v504 = vrot.slane %v459, 2
        %v506 = vadd.f32 %v502, %v504
        %v507 = vtanh.pop %v506
        %v508 = vstv %s499
        %v509 = vmul.f32 %v508, %v507
        %v510 = vadd.f32 %v498, %v509
        %s511 = sld [smem:[#allocation2 + $0x3]]
        %512 = vset.pattern.permute.xlu0 3
        %513 = vperm.xlu0 %512, %v404
        %v514 = vpop.permute.xlu0 %513
        %v516 = vrot.slane %v459, 3
        %v518 = vadd.f32 %v514, %v516
        %v519 = vtanh.pop %v518
        %v520 = vstv %s511
        %v521 = vmul.f32 %v520, %v519
        %v522 = vadd.f32 %v510, %v521
        %s523 = sld [smem:[#allocation2 + $0x4]]
        %524 = vset.pattern.permute.xlu0 4
        %525 = vperm.xlu0 %524, %v404
        %v526 = vpop.permute.xlu0 %525
        %v528 = vrot.slane %v459, 4
        %v530 = vadd.f32 %v526, %v528
        %v531 = vtanh.pop %v530
        %v532 = vstv %s523
        %v533 = vmul.f32 %v532, %v531
        %v534 = vadd.f32 %v522, %v533
        %s535 = sld [smem:[#allocation2 + $0x5]]
        %536 = vset.pattern.permute.xlu0 5
        %537 = vperm.xlu0 %536, %v404
        %v538 = vpop.permute.xlu0 %537
        %v540 = vrot.slane %v459, 5
        %v542 = vadd.f32 %v538, %v540
        %v543 = vtanh.pop %v542
        %v544 = vstv %s535
        %v545 = vmul.f32 %v544, %v543
        %v546 = vadd.f32 %v534, %v545
        %s547 = sld [smem:[#allocation2 + $0x6]]
        %548 = vset.pattern.permute.xlu0 6
        %549 = vperm.xlu0 %548, %v404
        %v550 = vpop.permute.xlu0 %549
        %v552 = vrot.slane %v459, 6
        %v554 = vadd.f32 %v550, %v552
        %v555 = vtanh.pop %v554
        %v556 = vstv %s547
        %v557 = vmul.f32 %v556, %v555
        %v558 = vadd.f32 %v546, %v557
        %s559 = sld [smem:[#allocation2 + $0x7]]
        %560 = vset.pattern.permute.xlu0 7
        %561 = vperm.xlu0 %560, %v404
        %v562 = vpop.permute.xlu0 %561
        %v564 = vrot.slane %v459, 7
        %v566 = vadd.f32 %v562, %v564
        %v567 = vtanh.pop %v566
        %v568 = vstv %s559
        %v569 = vmul.f32 %v568, %v567
        %v570 = vadd.f32 %v558, %v569
        %v571 = vld [vmem:[%s357] sm:$0x1]
        %v572 = vlaneseq
        %v573 = vand.u32 %v572, 127
        %574 = vset.pattern.permute.xlu0 0
        %575 = vperm.xlu0 %574, %v571
        %v576 = vpop.permute.xlu0 %575
        %v577 = vperm.slane %v576, 0
        %vm578 = vcmp.lt.s32.totalorder %v573, %v577
        %v579 = vsel %vm578, %v570, -1000000.0
        %vm580 = vcmask 73728
        %v581 = vsel %vm580, %v579, -inf
        %582 = vmax.xlane.f32.xlu0 %v581
        %v583 = vpop.xlane.xlu0 %582
        %v584 = vsub.f32 %v579, %v583
        %v585 = vmul.f32 %v584, 1.442695
        %v586 = vpow.pop %v585
        %v587 = vsel %vm580, %v586, 0.0
        %588 = vadd.xlane.f32.xlu0 %v587
        %v589 = vpop.xlane.xlu0 %588
        %v590 = vrcp.pop %v589
        %v591 = vmul.f32 %v589, %v590
        %v592 = vsub.f32 2.0, %v591
        %v593 = vmul.f32 %v590, %v592
        %v594 = vmul.f32 %v586, %v593
        %v595 = vld [vmem:[%s373] sm:$0xff]
        %v596 = vld [vmem:[%s373 + $0x8] sm:$0x3]
        %vm597 = vcmask 80896
        %v599 = vsel %vm597, %v594, 0
        %v602 = vsel %vm416, %v596, 0
        %604 = vmatpush.msra.mxu0 0.0
        %605 = vmatpush.msra.mxu0 0.0
        %606 = vmatpush.msra.mxu0 0.0
        %607 = vmatpush.msra.mxu0 0.0
        %608 = vmatpush.msra.mxu0 0.0
        %609 = vmatpush.msra.mxu0 0.0
        %610 = vmatpush.msra.mxu0 0.0
        %611 = vmatpush.msra.mxu0 0.0
        %612 = vmatpush.msra.mxu0 0.0
        %613 = vmatpush.msra.mxu0 0.0
        %614 = vmatpush.msra.mxu0 0.0
        %615 = vmatpush.msra.mxu0 0.0
        %616 = vmatpush.msra.mxu0 0.0
        %617 = vmatpush.msra.mxu0 0.0
        %618 = vmatpush.msra.mxu0 %v602
        %619 = vmatpush.msra.mxu0 %v595
        %620 = vmatmul.f32.gmra.mxu0 %v599
        %v621 = vpop.f32.mrf.mxu0
        %v622 = vadd.f32 0.0, %v621
        %623 = vdwg.mxu0
        %vm624 = vcmask 24576
        %625 = vst.msk [vmem:[%s351] sm:$0x1] %vm624, %v622
        %s626 = sand.u32 %s215, 1
        %s627 = scalar_lea.sflag [#allocation3], %s626
        %s628 = sand.u32 %s215, 1
        %s629 = scalar_lea.vmem [#allocation5], %s628
        // Predicated region
        $region53: #{tpu_custom_call.1} parent=47 // pred_check
          %p630 = pneg %p225
        $region54: #{tpu_custom_call.1} parent=47 // pred_check_branch
          %632 = sbr.rel (%p630) target = $region56
        $region55: #{tpu_custom_call.1} parent=47 // pred_region
          %634 = vsyncadd %s627, 0
          %s635 = sadd.s32 %s27, %s26
          %s636 = scalar_lea.hbm %s7, %s635
          %s638 = sshll.u32 %s629, 4
          %s639 = int_to_ptr.vmem [resolvable:$true] %s638
          %s640 = sshll.u32 %s636, 4
          %s641 = int_to_ptr.hbm [resolvable:$true] %s640
          %643 = dma.vmem_to_hbm [thread:$0]  %s639, 16, %s641, %s627
        $region56: #{tpu_custom_call.1} parent=47 // pred_fallthru
          _
      $region48: #{tpu_custom_call.1} parent=5 // pred_fallthru
        _
      %p644 = scmp.le.s32.totalorder 2, %s17
      // Predicated region
      $region57: #{tpu_custom_call.1} parent=5 // pred_check
        %p645 = pneg %p644
      $region58: #{tpu_custom_call.1} parent=5 // pred_check_branch
        %647 = sbr.rel (%p645) target = $region60
      $region59: #{tpu_custom_call.1} parent=5 // pred_region
        %s648 = ssub.s32 %s17, 2
        // Predicated region
        $region61: #{tpu_custom_call.1} parent=59 // pred_check
          %p649 = pneg %p231
        $region62: #{tpu_custom_call.1} parent=59 // pred_check_branch
          %651 = sbr.rel (%p649) target = $region64
        $region63: #{tpu_custom_call.1} parent=59 // pred_region
          %s652 = sand.u32 %s216, 1
          %s653 = scalar_lea.sflag [#allocation3], %s652
          %s654 = sand.u32 %s216, 1
          %s655 = scalar_lea.vmem [#allocation5], %s654
          %657 = dma.done %s653, 16
        $region64: #{tpu_custom_call.1} parent=59 // pred_fallthru
          _
      $region60: #{tpu_custom_call.1} parent=5 // pred_fallthru
        _
    $region6: #{tpu_custom_call.1} parent=1 // loop_footer
      %s21 = sadd.s32 1, %s17
    $region7: #{tpu_custom_call.1} parent=1 // loop_footer_branch
      %16 = sbr.rel target = $region3
    $region8: #{tpu_custom_call.1} parent=1 // loop_exit
      _
    %658 = vsyncpa [#allocation3], 1
    %s659 = scalar_lea.sflag [#allocation3], 1
    %660 = vsyncpa %s659, 1
    %661 = vsyncpa [#allocation4], 1
    %s662 = scalar_lea.sflag [#allocation4], 1
    %663 = vsyncpa %s662, 1

</llo_original>
